<compile_context>
chip_gen: v6e
topology: v6e:2x2x1
jax: 0.10.0
libtpu: 0.0.40
codegen_flags: <defaults>
</compile_context>

<pallas_src>
import functools

import jax
import jax.numpy as jnp
from jax import lax
from jax.experimental import pallas as pl
from jax.experimental.pallas import tpu as pltpu


def _vmem_limit_bytes():
    """Generation-aware scoped-VMEM budget.

    v7x (64 MiB physical / TC) -> ~48 MiB; v5e/v6e (128 MiB) -> ~96 MiB.
    Falls back to the conservative v7x number if the query is unavailable.
    """
    phys = 64 * 1024 * 1024
    try:
        info = pltpu.get_tpu_info()
        phys = int(getattr(info, "vmem_capacity_bytes", phys)) or phys
    except Exception:
        pass
    return min(phys * 3 // 4, 100 * 1024 * 1024)


def _fit_tile(t, size, per_unit_bytes, fixed_bytes, vmem_limit, require_divisor):
    """Largest multiple of 128 (<= t, <= size) whose per-step VMEM footprint
    (per_unit_bytes * tile, already including double-buffering) plus the fixed
    resident bytes fits comfortably inside vmem_limit."""
    budget = vmem_limit * 3 // 4 - fixed_bytes
    if budget < per_unit_bytes * 128:
        budget = per_unit_bytes * 128            # always allow at least 128
    t = min(t, size, budget // per_unit_bytes)
    t = max((t // 128) * 128, 128)
    t = min(t, size)
    if require_divisor:
        # avoid ragged in-kernel slicing of the resident block
        while t > 128 and size % t:
            t -= 128
        if size % t:
            t = size
    return int(t)


def _dot_t(a, b):
    """a: [M, H], b: [N, H] -> [M, N] f32; contract on H with transposed RHS
    (native MXU path, no weight transpose).  Handles mixed input dtypes."""
    if a.dtype != b.dtype:
        ct = jnp.promote_types(a.dtype, b.dtype)
        a = a.astype(ct)
        b = b.astype(ct)
    return lax.dot_general(
        a, b, (((1,), (1,)), ((), ())), preferred_element_type=jnp.float32
    )


def _medusa_kernel(x_ref, w_ref, b_ref, out_ref, *, n_heads, tn):
    # x_ref:   [B, H]              resident hidden states (matmul LHS)
    # w_ref:   [n_heads, tn, H]    per-head row tile of the medusa weight
    # b_ref:   [n_heads, tn]       per-head bias tile
    # out_ref: [B, n_heads, tn]    med[b, i, :] = x[b, cols] + SiLU(x[b] @ W_i^T + b_i)
    j = pl.program_id(0)
    x = x_ref[...]
    col0 = pl.multiple_of(j * tn, tn)
    xc = x_ref[:, pl.ds(col0, tn)].astype(jnp.float32)   # residual column tile
    for i in range(n_heads):                              # static unroll, n_heads tiny
        y = _dot_t(x, w_ref[i]) + b_ref[i].astype(jnp.float32)
        y = y * jax.nn.sigmoid(y)                         # SiLU in f32 (v5e-safe)
        out_ref[:, i, :] = (xc + y).astype(out_ref.dtype)  # add in f32, cast once


def _lm_head_fused_kernel(lhs_ref, w_ref, logits_ref, spec_ref, *, nb):
    # One (tv, H) weight tile is streamed from HBM once per grid step and
    # pushed through the MXU once against the fused [x ; medusa] LHS.
    res = _dot_t(lhs_ref[...], w_ref[...])        # [(n_heads+1)*B, tv], f32 accum
    logits_ref[...] = res[:nb].astype(logits_ref.dtype)
    spec_ref[...] = res[nb:].astype(spec_ref.dtype)


def _lm_head_kernel(x_ref, w_ref, o_ref):
    o_ref[...] = _dot_t(x_ref[...], w_ref[...]).astype(o_ref.dtype)


def medusa_head_v2(x, w_medusa, b_medusa, w_lm, *, tn=None, tv=None, tm=128):
    """Forward pass of MedusaHeadV2 (world_size == 1).

    x:        [B, H]
    w_medusa: [n_heads*H, H]   (PyTorch nn.Linear weight layout [out, in])
    b_medusa: [n_heads*H]
    w_lm:     [V, H]
    Returns (logits [B, V], speculative_logits [B, n_heads, V]) or
            (logits [B, V], None) when B > 128.
    Weights/activations may be bf16 (accumulation stays f32).
    """
    B, H = x.shape
    V = w_lm.shape[0]
    n_heads = w_medusa.shape[0] // H
    x_isz = x.dtype.itemsize
    w_isz = w_lm.dtype.itemsize
    vmem_limit = _vmem_limit_bytes()

    # dtype-aware default tiles (then clamped to the VMEM budget below)
    if tv is None:
        tv = 2048 if w_isz <= 2 else 1024
    if tn is None:
        tn = 512 if w_isz <= 2 else 256

    # ---- B > 128 fallback: lm_head(x) only ----------------------------------
    if B > 128:
        tm_ = max((min(tm, B) // 8) * 8, 8)
        tv_b = _fit_tile(
            tv, V,
            per_unit_bytes=2 * (H * w_isz + tm_ * x_isz),   # w tile + out tile cols
            fixed_bytes=2 * tm_ * H * x_isz,                # streamed x tile buffers
            vmem_limit=vmem_limit, require_divisor=False)
        logits = pl.pallas_call(
            _lm_head_kernel,
            out_shape=jax.ShapeDtypeStruct((B, V), x.dtype),
            # V is the slow (outer) axis: each (tv, H) weight tile is DMA'd once
            # and stays resident across the whole inner M sweep.
            grid=(pl.cdiv(V, tv_b), pl.cdiv(B, tm_)),
            in_specs=[
                pl.BlockSpec((tm_, H), lambda v, m: (m, 0)),
                pl.BlockSpec((tv_b, H), lambda v, m: (v, 0)),   # resident across m
            ],
            out_specs=pl.BlockSpec((tm_, tv_b), lambda v, m: (m, v)),
            compiler_params=pltpu.CompilerParams(
                dimension_semantics=("parallel", "arbitrary"),
                vmem_limit_bytes=vmem_limit),
        )(x, w_lm)
        return logits, None

    # ---- stage 1: medusa heads, tiled over columns of H ----------------------
    w3 = w_medusa.reshape(n_heads, H, H)   # free reshape, no transpose
    b2 = b_medusa.reshape(n_heads, H)
    tn_ = _fit_tile(
        tn, H,
        per_unit_bytes=2 * (n_heads * H * w_isz              # weight stream
                            + n_heads * b_medusa.dtype.itemsize   # bias stream
                            + B * n_heads * x_isz),          # output stream
        fixed_bytes=2 * B * H * x_isz,                       # resident x
        vmem_limit=vmem_limit, require_divisor=True)
    med = pl.pallas_call(
        functools.partial(_medusa_kernel, n_heads=n_heads, tn=tn_),
        out_shape=jax.ShapeDtypeStruct((B, n_heads, H), x.dtype),
        grid=(H // tn_,),
        in_specs=[
            pl.BlockSpec((B, H), lambda j: (0, 0)),               # x resident
            pl.BlockSpec((n_heads, tn_, H), lambda j: (0, j, 0)),  # weight stream
            pl.BlockSpec((n_heads, tn_), lambda j: (0, j)),        # bias stream
        ],
        out_specs=pl.BlockSpec((B, n_heads, tn_), lambda j: (0, 0, j)),
        compiler_params=pltpu.CompilerParams(
            dimension_semantics=("parallel",), vmem_limit_bytes=vmem_limit),
    )(x, w3, b2)

    # ---- stage 2: fused lm_head over [x ; medusa], streaming w_lm once -------
    # Single LHS so each stationary (tv, H) weight tile is pushed through the
    # MXU once per grid step; output row ranges split back into logits / spec.
    lhs = jnp.concatenate([x, med.reshape(B * n_heads, H)], axis=0)
    tv_ = _fit_tile(
        tv, V,
        per_unit_bytes=2 * (H * w_isz + (n_heads + 1) * B * x_isz),
        fixed_bytes=2 * (n_heads + 1) * B * H * x_isz,       # resident LHS
        vmem_limit=vmem_limit, require_divisor=False)
    # Ragged last V tile: padded weight rows are garbage but only feed output
    # columns beyond V, whose writeback Pallas masks (benign).
    logits, spec_flat = pl.pallas_call(
        functools.partial(_lm_head_fused_kernel, nb=B),
        out_shape=(
            jax.ShapeDtypeStruct((B, V), x.dtype),
            jax.ShapeDtypeStruct((B * n_heads, V), x.dtype),
        ),
        grid=(pl.cdiv(V, tv_),),
        in_specs=[
            pl.BlockSpec(((n_heads + 1) * B, H), lambda j: (0, 0)),  # LHS resident
            pl.BlockSpec((tv_, H), lambda j: (j, 0)),                # weight stream
        ],
        out_specs=(
            pl.BlockSpec((B, tv_), lambda j: (0, j)),
            pl.BlockSpec((B * n_heads, tv_), lambda j: (0, j)),
        ),
        compiler_params=pltpu.CompilerParams(
            dimension_semantics=("parallel",), vmem_limit_bytes=vmem_limit),
    )(lhs, w_lm)

    return logits, spec_flat.reshape(B, n_heads, V)   # free row-major reshape


if __name__ == "__main__":
    key = jax.random.PRNGKey(0)
    B, H, V, n_heads = 8, 256, 512, 4
    k1, k2, k3, k4 = jax.random.split(key, 4)
    x = jax.random.normal(k1, (B, H), jnp.float32)
    w_medusa = jax.random.normal(k2, (n_heads * H, H), jnp.float32) * 0.02
    b_medusa = jax.random.normal(k3, (n_heads * H,), jnp.float32) * 0.02
    w_lm = jax.random.normal(k4, (V, H), jnp.float32) * 0.02

    # pure-JAX reference
    med_ref = jax.nn.silu(x @ w_medusa.T + b_medusa).reshape(B, n_heads, H)
    stacked = jnp.concatenate([x[:, None, :], x[:, None, :] + med_ref], axis=1)
    ref = stacked @ w_lm.T

    # small tiles so the test exercises multi-step grids on both stages
    logits, spec = medusa_head_v2(x, w_medusa, b_medusa, w_lm, tn=128, tv=128)
    jax.block_until_ready((logits, spec))
    assert logits.shape == (B, V) and spec.shape == (B, n_heads, V)
    assert jnp.allclose(logits, ref[:, 0, :], atol=5e-3, rtol=5e-3)
    assert jnp.allclose(spec, ref[:, 1:, :], atol=5e-3, rtol=5e-3)

    # bf16 weights/activations (halves HBM traffic of the DMA-bound stages)
    logits_bf, spec_bf = medusa_head_v2(
        x.astype(jnp.bfloat16), w_medusa.astype(jnp.bfloat16),
        b_medusa.astype(jnp.bfloat16), w_lm.astype(jnp.bfloat16),
        tn=128, tv=128)
    jax.block_until_ready((logits_bf, spec_bf))
    assert jnp.allclose(logits_bf.astype(jnp.float32), ref[:, 0, :],
                        atol=5e-2, rtol=5e-2)
    assert jnp.allclose(spec_bf.astype(jnp.float32), ref[:, 1:, :],
                        atol=5e-2, rtol=5e-2)

    # B > 128 fallback: lm_head only; w_lm streamed exactly once (V outer axis)
    xb = jax.random.normal(k1, (256, H), jnp.float32)
    logits_b, spec_b = medusa_head_v2(xb, w_medusa, b_medusa, w_lm, tv=128)
    jax.block_until_ready(logits_b)
    assert spec_b is None
    assert jnp.allclose(logits_b, xb @ w_lm.T, atol=5e-3, rtol=5e-3)

    print("KERNEL_OK")
</pallas_src>

<mosaic_0001>
module attributes {stable_mosaic.version = 11 : i64} {
  func.func @_medusa_kernel(%arg0: i32, %arg1: memref<8x256xf32, #tpu.memory_space<vmem>>, %arg2: memref<4x128x256xf32, #tpu.memory_space<vmem>>, %arg3: memref<4x128xf32, #tpu.memory_space<vmem>>, %arg4: memref<8x4x128xf32, #tpu.memory_space<vmem>>) attributes {dimension_semantics = [#tpu.dimension_semantics<parallel>], iteration_bounds = array<i64: 2>, scalar_prefetch = 0 : i64, scratch_operands = 0 : i64, tpu.core_type = #tpu.core_type<tc>, window_params = [{pipeline_mode = #tpu.pipeline_mode<synchronous>, transform_indices = @transform_0, window_bounds = array<i64: 8, 256>}, {transform_indices = @transform_1, window_bounds = array<i64: 4, 128, 256>}, {transform_indices = @transform_2, window_bounds = array<i64: 4, 128>}, {transform_indices = @transform_3, window_bounds = array<i64: 8, 4, 128>}]} {
    %c0 = arith.constant 0 : index
    %c0_0 = arith.constant 0 : index
    %0 = vector.load %arg1[%c0, %c0_0] : memref<8x256xf32, #tpu.memory_space<vmem>>, vector<8x256xf32>
    %c128_i32 = arith.constant 128 : i32
    %1 = arith.muli %arg0, %c128_i32 : i32
    %2 = tpu.assume_multiple %1, 128 : i32
    %c0_1 = arith.constant 0 : index
    %3 = arith.index_cast %2 : i32 to index
    %4 = vector.load %arg1[%c0_1, %3] : memref<8x256xf32, #tpu.memory_space<vmem>>, vector<8x128xf32>
    %c0_2 = arith.constant 0 : index
    %c0_3 = arith.constant 0 : index
    %c0_4 = arith.constant 0 : index
    %5 = vector.load %arg2[%c0_2, %c0_3, %c0_4] : memref<4x128x256xf32, #tpu.memory_space<vmem>>, vector<1x128x256xf32>
    %6 = vector.shape_cast %5 : vector<1x128x256xf32> to vector<128x256xf32>
    %cst = arith.constant dense<0.000000e+00> : vector<8x128xf32>
    %7 = tpu.matmul %0, %6, %cst {dimension_numbers = #tpu.dot_dimension_numbers<[1], [1], [0], [0], [0, 0, 1, 0], [], []>} : vector<8x256xf32>, vector<128x256xf32>, vector<8x128xf32> -> vector<8x128xf32>
    %c0_5 = arith.constant 0 : index
    %c0_6 = arith.constant 0 : index
    %8 = vector.load %arg3[%c0_5, %c0_6] : memref<4x128xf32, #tpu.memory_space<vmem>>, vector<1x128xf32>
    %9 = vector.shape_cast %8 : vector<1x128xf32> to vector<128xf32>
    %10 = vector.shape_cast %9 : vector<128xf32> to vector<1x128xf32>
    %11 = vector.broadcast %10 : vector<1x128xf32> to vector<8x128xf32>
    %12 = arith.addf %7, %11 : vector<8x128xf32>
    %13 = arith.negf %12 : vector<8x128xf32>
    %14 = math.exp %13 : vector<8x128xf32>
    %cst_7 = arith.constant 1.000000e+00 : f32
    %15 = vector.broadcast %cst_7 : f32 to vector<8x128xf32>
    %16 = arith.addf %15, %14 : vector<8x128xf32>
    %17 = arith.divf %15, %16 : vector<8x128xf32>
    %18 = arith.mulf %12, %17 : vector<8x128xf32>
    %19 = arith.addf %4, %18 : vector<8x128xf32>
    %c0_8 = arith.constant 0 : index
    %c0_9 = arith.constant 0 : index
    %c0_10 = arith.constant 0 : index
    %20 = vector.load %arg4[%c0_8, %c0_9, %c0_10] : memref<8x4x128xf32, #tpu.memory_space<vmem>>, vector<8x1x128xf32>
    %21 = vector.shape_cast %20 : vector<8x1x128xf32> to vector<8x128xf32>
    %22 = vector.shape_cast %19 : vector<8x128xf32> to vector<8x1x128xf32>
    tpu.vector_store %arg4[%c0_8, %c0_9, %c0_10], %22 {strides = array<i32>} : memref<8x4x128xf32, #tpu.memory_space<vmem>>, vector<8x1x128xf32>,
    %c1 = arith.constant 1 : index
    %c0_11 = arith.constant 0 : index
    %c0_12 = arith.constant 0 : index
    %23 = vector.load %arg2[%c1, %c0_11, %c0_12] : memref<4x128x256xf32, #tpu.memory_space<vmem>>, vector<1x128x256xf32>
    %24 = vector.shape_cast %23 : vector<1x128x256xf32> to vector<128x256xf32>
    %cst_13 = arith.constant dense<0.000000e+00> : vector<8x128xf32>
    %25 = tpu.matmul %0, %24, %cst_13 {dimension_numbers = #tpu.dot_dimension_numbers<[1], [1], [0], [0], [0, 0, 1, 0], [], []>} : vector<8x256xf32>, vector<128x256xf32>, vector<8x128xf32> -> vector<8x128xf32>
    %c1_14 = arith.constant 1 : index
    %c0_15 = arith.constant 0 : index
    %26 = vector.load %arg3[%c1_14, %c0_15] : memref<4x128xf32, #tpu.memory_space<vmem>>, vector<1x128xf32>
    %27 = vector.shape_cast %26 : vector<1x128xf32> to vector<128xf32>
    %28 = vector.shape_cast %27 : vector<128xf32> to vector<1x128xf32>
    %29 = vector.broadcast %28 : vector<1x128xf32> to vector<8x128xf32>
    %30 = arith.addf %25, %29 : vector<8x128xf32>
    %31 = arith.negf %30 : vector<8x128xf32>
    %32 = math.exp %31 : vector<8x128xf32>
    %cst_16 = arith.constant 1.000000e+00 : f32
    %33 = vector.broadcast %cst_16 : f32 to vector<8x128xf32>
    %34 = arith.addf %33, %32 : vector<8x128xf32>
    %35 = arith.divf %33, %34 : vector<8x128xf32>
    %36 = arith.mulf %30, %35 : vector<8x128xf32>
    %37 = arith.addf %4, %36 : vector<8x128xf32>
    %c0_17 = arith.constant 0 : index
    %c1_18 = arith.constant 1 : index
    %c0_19 = arith.constant 0 : index
    %38 = vector.load %arg4[%c0_17, %c1_18, %c0_19] : memref<8x4x128xf32, #tpu.memory_space<vmem>>, vector<8x1x128xf32>
    %39 = vector.shape_cast %38 : vector<8x1x128xf32> to vector<8x128xf32>
    %40 = vector.shape_cast %37 : vector<8x128xf32> to vector<8x1x128xf32>
    tpu.vector_store %arg4[%c0_17, %c1_18, %c0_19], %40 {strides = array<i32>} : memref<8x4x128xf32, #tpu.memory_space<vmem>>, vector<8x1x128xf32>,
    %c2 = arith.constant 2 : index
    %c0_20 = arith.constant 0 : index
    %c0_21 = arith.constant 0 : index
    %41 = vector.load %arg2[%c2, %c0_20, %c0_21] : memref<4x128x256xf32, #tpu.memory_space<vmem>>, vector<1x128x256xf32>
    %42 = vector.shape_cast %41 : vector<1x128x256xf32> to vector<128x256xf32>
    %cst_22 = arith.constant dense<0.000000e+00> : vector<8x128xf32>
    %43 = tpu.matmul %0, %42, %cst_22 {dimension_numbers = #tpu.dot_dimension_numbers<[1], [1], [0], [0], [0, 0, 1, 0], [], []>} : vector<8x256xf32>, vector<128x256xf32>, vector<8x128xf32> -> vector<8x128xf32>
    %c2_23 = arith.constant 2 : index
    %c0_24 = arith.constant 0 : index
    %44 = vector.load %arg3[%c2_23, %c0_24] : memref<4x128xf32, #tpu.memory_space<vmem>>, vector<1x128xf32>
    %45 = vector.shape_cast %44 : vector<1x128xf32> to vector<128xf32>
    %46 = vector.shape_cast %45 : vector<128xf32> to vector<1x128xf32>
    %47 = vector.broadcast %46 : vector<1x128xf32> to vector<8x128xf32>
    %48 = arith.addf %43, %47 : vector<8x128xf32>
    %49 = arith.negf %48 : vector<8x128xf32>
    %50 = math.exp %49 : vector<8x128xf32>
    %cst_25 = arith.constant 1.000000e+00 : f32
    %51 = vector.broadcast %cst_25 : f32 to vector<8x128xf32>
    %52 = arith.addf %51, %50 : vector<8x128xf32>
    %53 = arith.divf %51, %52 : vector<8x128xf32>
    %54 = arith.mulf %48, %53 : vector<8x128xf32>
    %55 = arith.addf %4, %54 : vector<8x128xf32>
    %c0_26 = arith.constant 0 : index
    %c2_27 = arith.constant 2 : index
    %c0_28 = arith.constant 0 : index
    %56 = vector.load %arg4[%c0_26, %c2_27, %c0_28] : memref<8x4x128xf32, #tpu.memory_space<vmem>>, vector<8x1x128xf32>
    %57 = vector.shape_cast %56 : vector<8x1x128xf32> to vector<8x128xf32>
    %58 = vector.shape_cast %55 : vector<8x128xf32> to vector<8x1x128xf32>
    tpu.vector_store %arg4[%c0_26, %c2_27, %c0_28], %58 {strides = array<i32>} : memref<8x4x128xf32, #tpu.memory_space<vmem>>, vector<8x1x128xf32>,
    %c3 = arith.constant 3 : index
    %c0_29 = arith.constant 0 : index
    %c0_30 = arith.constant 0 : index
    %59 = vector.load %arg2[%c3, %c0_29, %c0_30] : memref<4x128x256xf32, #tpu.memory_space<vmem>>, vector<1x128x256xf32>
    %60 = vector.shape_cast %59 : vector<1x128x256xf32> to vector<128x256xf32>
    %cst_31 = arith.constant dense<0.000000e+00> : vector<8x128xf32>
    %61 = tpu.matmul %0, %60, %cst_31 {dimension_numbers = #tpu.dot_dimension_numbers<[1], [1], [0], [0], [0, 0, 1, 0], [], []>} : vector<8x256xf32>, vector<128x256xf32>, vector<8x128xf32> -> vector<8x128xf32>
    %c3_32 = arith.constant 3 : index
    %c0_33 = arith.constant 0 : index
    %62 = vector.load %arg3[%c3_32, %c0_33] : memref<4x128xf32, #tpu.memory_space<vmem>>, vector<1x128xf32>
    %63 = vector.shape_cast %62 : vector<1x128xf32> to vector<128xf32>
    %64 = vector.shape_cast %63 : vector<128xf32> to vector<1x128xf32>
    %65 = vector.broadcast %64 : vector<1x128xf32> to vector<8x128xf32>
    %66 = arith.addf %61, %65 : vector<8x128xf32>
    %67 = arith.negf %66 : vector<8x128xf32>
    %68 = math.exp %67 : vector<8x128xf32>
    %cst_34 = arith.constant 1.000000e+00 : f32
    %69 = vector.broadcast %cst_34 : f32 to vector<8x128xf32>
    %70 = arith.addf %69, %68 : vector<8x128xf32>
    %71 = arith.divf %69, %70 : vector<8x128xf32>
    %72 = arith.mulf %66, %71 : vector<8x128xf32>
    %73 = arith.addf %4, %72 : vector<8x128xf32>
    %c0_35 = arith.constant 0 : index
    %c3_36 = arith.constant 3 : index
    %c0_37 = arith.constant 0 : index
    %74 = vector.load %arg4[%c0_35, %c3_36, %c0_37] : memref<8x4x128xf32, #tpu.memory_space<vmem>>, vector<8x1x128xf32>
    %75 = vector.shape_cast %74 : vector<8x1x128xf32> to vector<8x128xf32>
    %76 = vector.shape_cast %73 : vector<8x128xf32> to vector<8x1x128xf32>
    tpu.vector_store %arg4[%c0_35, %c3_36, %c0_37], %76 {strides = array<i32>} : memref<8x4x128xf32, #tpu.memory_space<vmem>>, vector<8x1x128xf32>,
    return
  }
  func.func @transform_0(%arg0: i32) -> (i32, i32) {
    %c0_i32 = arith.constant 0 : i32
    %c0_i32_0 = arith.constant 0 : i32
    %c0_i32_1 = arith.constant 0 : i32
    return %c0_i32, %c0_i32_0 : i32, i32
  }
  func.func @transform_1(%arg0: i32) -> (i32, i32, i32) {
    %c0_i32 = arith.constant 0 : i32
    %c0_i32_0 = arith.constant 0 : i32
    %c0_i32_1 = arith.constant 0 : i32
    return %c0_i32, %arg0, %c0_i32_0 : i32, i32, i32
  }
  func.func @transform_2(%arg0: i32) -> (i32, i32) {
    %c0_i32 = arith.constant 0 : i32
    %c0_i32_0 = arith.constant 0 : i32
    return %c0_i32, %arg0 : i32, i32
  }
  func.func @transform_3(%arg0: i32) -> (i32, i32, i32) {
    %c0_i32 = arith.constant 0 : i32
    %c0_i32_0 = arith.constant 0 : i32
    %c0_i32_1 = arith.constant 0 : i32
    return %c0_i32, %c0_i32_0, %arg0 : i32, i32, i32
  }
}

</mosaic_0001>

<llo_original>
// kernel: tpu_custom_call.1
$region0: #{tpu_custom_call.1}
  #allocation0 [shape = 'u32[]', space=smem, size = 0x4, offset = 0x4, fixed_abs, tag = 'smem constant byte address 0x4 - core index']
  #allocation1 [shape = 'u32[144,128]{1,0:T(1,128)}', space=vmem, size = 0x12000, scoped, tag = 'internal scratch']
  #allocation9 [shape = 's32[]', space=sflag, size = 0x4, offset = 0, fixed_abs, tag = 'sflag constant byte address 0x0 - dummy sync flag']
  %s0 = inlined_call_operand.hbm [shape: f32[8,256], index: 0, kind: input, shape index: {}]
  %s1 = inlined_call_operand.hbm [shape: f32[4,256,256], index: 1, kind: input, shape index: {}]
  %s2 = inlined_call_operand.hbm [shape: f32[4,256], index: 2, kind: input, shape index: {}]
  %s3 = inlined_call_operand.hbm [shape: f32[8,4,256], index: 3, kind: output, shape index: {}]
  %s4 = sld [smem:[#allocation0]]
  $region57: #{tpu_custom_call.1} parent=0
    _
  %s6 = ssub.s32 1, %s4
  %s7 = scalar_select 0, %s6, %s4
  $region1: #{tpu_custom_call.1} parent=0
    #allocation2 [shape = 'u8[8192]{0}', space=vmem, size = 0x2000, scoped, tag = 'input window, operand 0, single buffered']
    #allocation3 [shape = 's32[2]{0}', space=sflag, size = 0x8, scoped, tag = 'scoped memory for tpu_custom_call.1']
    #allocation4 [shape = 's32[2]{0}', space=sflag, size = 0x8, scoped, tag = 'scoped memory for tpu_custom_call.1']
    #allocation5 [shape = 'u8[1048576]{0}', space=vmem, size = 0x100000, scoped, tag = 'input window, operand 1']
    #allocation6 [shape = 's32[2]{0}', space=sflag, size = 0x8, scoped, tag = 'scoped memory for tpu_custom_call.1']
    #allocation7 [shape = 'u8[4096]{0}', space=vmem, size = 0x1000, scoped, tag = 'input window, operand 2']
    #allocation8 [shape = 'u8[32768]{0}', space=vmem, size = 0x8000, scoped, tag = 'output window, operand 0']
    %8 = vsyncpa [#allocation3], 0
    %9 = vsyncpa [#allocation6], 0
    %s10 = scalar_lea.sflag [#allocation6], 1
    %11 = vsyncpa %s10, 0
    %12 = vsyncpa [#allocation4], 0
    %s13 = scalar_lea.sflag [#allocation4], 1
    %14 = vsyncpa %s13, 0
    loop: start=0, step=1, limit=4
    $region2: #{tpu_custom_call.1} parent=1 // loop_pre_header
      _
    $region3: #{tpu_custom_call.1} parent=1 // loop_header
      %s16 = sphi 0, %s20
      %p17 = scmp.ge.s32.totalorder %s16, 4
      %s24 = sphi 0, %s24
      %s26 = sphi 0, %s24
      %s27 = sphi 0, %s26
      %s41 = sphi 0, %s27
      %s47 = sphi 0, %s49
      %s50 = sphi 0, %s47
      %s51 = sphi 0, %s50
      %s67 = sphi 0, %s51
      %s73 = sphi 0, %s75
      %s76 = sphi 0, %s73
      %s77 = sphi 0, %s76
      %s93 = sphi 0, %s77
      %s99 = sphi 0, %s101
      %s102 = sphi 0, %s99
      %s103 = sphi 0, %s102
      %s119 = sphi 0, %s103
    $region4: #{tpu_custom_call.1} parent=1 // loop_header_branch
      %19 = sbr.rel (%p17) target = $region8
    $region5: #{tpu_custom_call.1} parent=1 // loop_body
      %s21 = ssub.s32 %s16, 1
      %s22 = ssub.s32 %s16, 2
      %s23 = sadd.s32 %s16, 1
      %s25 = sadd.s32 %s24, 1
      %p28 = scmp.eq.s32.totalorder %s16, 1
      %p29 = scmp.ne.s32.totalorder %s24, %s26
      %p30 = scmp.eq.s32.totalorder %s16, 0
      %p31 = por %p29, %p30
      %p32 = scmp.ne.s32.totalorder %s24, %s26
      %p33 = scmp.eq.s32.totalorder %s21, 1
      %p34 = por %p32, %p33
      %p35 = scmp.ne.s32.totalorder %s26, %s27
      %p36 = scmp.eq.s32.totalorder %s21, 0
      %p37 = por %p35, %p36
      %p38 = scmp.ne.s32.totalorder %s26, %s27
      %p39 = scmp.eq.s32.totalorder %s22, 1
      %p40 = por %p38, %p39
      %p42 = scmp.ne.s32.totalorder %s27, %s41
      %p43 = scmp.eq.s32.totalorder %s22, 0
      %p44 = por %p42, %p43
      %s45 = ssub.s32 %s16, %s23
      %p46 = scmp.eq.s32.totalorder %s45, 0
      %s48 = sadd.s32 %s47, 1
      %s49 = scalar_select %p46, %s47, %s48
      %p52 = pneg %p46
      %p53 = scmp.eq.s32.totalorder %s16, 1
      %p54 = por %p52, %p53
      %p55 = scmp.ne.s32.totalorder %s47, %s50
      %p56 = scmp.eq.s32.totalorder %s16, 0
      %p57 = por %p55, %p56
      %p58 = scmp.ne.s32.totalorder %s47, %s50
      %p59 = scmp.eq.s32.totalorder %s21, 1
      %p60 = por %p58, %p59
      %p61 = scmp.ne.s32.totalorder %s50, %s51
      %p62 = scmp.eq.s32.totalorder %s21, 0
      %p63 = por %p61, %p62
      %p64 = scmp.ne.s32.totalorder %s50, %s51
      %p65 = scmp.eq.s32.totalorder %s22, 1
      %p66 = por %p64, %p65
      %p68 = scmp.ne.s32.totalorder %s51, %s67
      %p69 = scmp.eq.s32.totalorder %s22, 0
      %p70 = por %p68, %p69
      %s71 = ssub.s32 %s16, %s23
      %p72 = scmp.eq.s32.totalorder %s71, 0
      %s74 = sadd.s32 %s73, 1
      %s75 = scalar_select %p72, %s73, %s74
      %p78 = pneg %p72
      %p79 = scmp.eq.s32.totalorder %s16, 1
      %p80 = por %p78, %p79
      %p81 = scmp.ne.s32.totalorder %s73, %s76
      %p82 = scmp.eq.s32.totalorder %s16, 0
      %p83 = por %p81, %p82
      %p84 = scmp.ne.s32.totalorder %s73, %s76
      %p85 = scmp.eq.s32.totalorder %s21, 1
      %p86 = por %p84, %p85
      %p87 = scmp.ne.s32.totalorder %s76, %s77
      %p88 = scmp.eq.s32.totalorder %s21, 0
      %p89 = por %p87, %p88
      %p90 = scmp.ne.s32.totalorder %s76, %s77
      %p91 = scmp.eq.s32.totalorder %s22, 1
      %p92 = por %p90, %p91
      %p94 = scmp.ne.s32.totalorder %s77, %s93
      %p95 = scmp.eq.s32.totalorder %s22, 0
      %p96 = por %p94, %p95
      %s97 = ssub.s32 %s16, %s23
      %p98 = scmp.eq.s32.totalorder %s97, 0
      %s100 = sadd.s32 %s99, 1
      %s101 = scalar_select %p98, %s99, %s100
      %p104 = pneg %p98
      %p105 = scmp.eq.s32.totalorder %s16, 1
      %p106 = por %p104, %p105
      %p107 = scmp.ne.s32.totalorder %s99, %s102
      %p108 = scmp.eq.s32.totalorder %s16, 0
      %p109 = por %p107, %p108
      %p110 = scmp.ne.s32.totalorder %s99, %s102
      %p111 = scmp.eq.s32.totalorder %s21, 1
      %p112 = por %p110, %p111
      %p113 = scmp.ne.s32.totalorder %s102, %s103
      %p114 = scmp.eq.s32.totalorder %s21, 0
      %p115 = por %p113, %p114
      %p116 = scmp.ne.s32.totalorder %s102, %s103
      %p117 = scmp.eq.s32.totalorder %s22, 1
      %p118 = por %p116, %p117
      %p120 = scmp.ne.s32.totalorder %s103, %s119
      %p121 = scmp.eq.s32.totalorder %s22, 0
      %p122 = por %p120, %p121
      %p123 = scmp.le.s32.totalorder 1, %s16
      %p124 = scmp.lt.s32.totalorder %s16, 3
      %p125 = pnand %p123, %p124
      %p126 = pneg %p125
      // Predicated region
      $region9: #{tpu_custom_call.1} parent=5 // pred_check
        _
      $region10: #{tpu_custom_call.1} parent=5 // pred_check_branch
        %128 = sbr.rel (%p125) target = $region12
      $region11: #{tpu_custom_call.1} parent=5 // pred_region
        %s129 = ssub.s32 %s16, 1
        // Predicated region
        $region13: #{tpu_custom_call.1} parent=11 // pred_check
          %p130 = pneg %p37
        $region14: #{tpu_custom_call.1} parent=11 // pred_check_branch
          %132 = sbr.rel (%p130) target = $region16
        $region15: #{tpu_custom_call.1} parent=11 // pred_region
          %s134 = ssub.s32 256, 256
          %135 = vsyncadd [#allocation3], %s134
          %s137 = sshll.u32 [#allocation2], 4
          %s138 = int_to_ptr.vmem [resolvable:$true] %s137
          %140 = dma.hbm_to_vmem [thread:$0]  %s0, 256, %s138, [#allocation3]
        $region16: #{tpu_custom_call.1} parent=11 // pred_fallthru
          _
      $region12: #{tpu_custom_call.1} parent=5 // pred_fallthru
        _
      %p141 = scmp.lt.s32.totalorder %s16, 2
      // Predicated region
      $region17: #{tpu_custom_call.1} parent=5 // pred_check
        %p142 = pneg %p141
      $region18: #{tpu_custom_call.1} parent=5 // pred_check_branch
        %144 = sbr.rel (%p142) target = $region20
      $region19: #{tpu_custom_call.1} parent=5 // pred_region
        // Predicated region
        $region21: #{tpu_custom_call.1} parent=19 // pred_check
          %p145 = pneg %p57
        $region22: #{tpu_custom_call.1} parent=19 // pred_check_branch
          %147 = sbr.rel (%p145) target = $region24
        $region23: #{tpu_custom_call.1} parent=19 // pred_region
          #allocation10 [shape = 'u32[6]{0}', space=smem, size = 0x18, scoped, tag = 'DMA stride descriptor']
          %s148 = sand.u32 %s16, 1
          %s149 = scalar_lea.sflag [#allocation6], %s148
          %s150 = sand.u32 %s47, 1
          %s151 = smul.addr %s150, 1024
          %s152 = scalar_lea.vmem [#allocation5], %s151
          %s153 = smul.u32 16, %s16
          %s155 = ssub.s32 16384, 16384
          %156 = vsyncadd %s149, %s155
          %s157 = smul.addr %s153, 2
          %s158 = smul.addr %s157, 128
          %s159 = scalar_lea.hbm %s1, %s158
          %s161 = sshll.u32 1, 14
          %s162 = sxor.u32 4294967295, %s161
          %s164 = sld [smem:[#allocation0]]
          %s165 = sadd.s32 2, %s164
          %s167 = sshll.u32 7, 26
          %s168 = sxor.u32 4294967295, %s167
          %s169 = sand.u32 0, %s168
          %s170 = sshll.u32 %s165, 26
          %s171 = sor.u32 %s169, %s170
          %s172 = sshll.u32 %s152, 4
          %s173 = int_to_ptr.vmem [resolvable:$true] %s172
          %179 = sst [smem:[#allocation10]] 8192
          %s180 = scalar_lea.smem [#allocation10], 1
          %181 = sst [smem:[%s180]] 4096
          %s182 = scalar_lea.smem [#allocation10], 2
          %183 = sst [smem:[%s182]] 16
          %s184 = scalar_lea.smem [#allocation10], 3
          %185 = sst [smem:[%s184]] 256
          %s186 = scalar_lea.smem [#allocation10], 4
          %187 = sst [smem:[%s186]] 256
          %s188 = scalar_lea.smem [#allocation10], 5
          %189 = sst [smem:[%s188]] 16
          %191 = dma.general %s159, 16384, %s173, %s149, 131072, [#allocation10], %s171, 0
        $region24: #{tpu_custom_call.1} parent=19 // pred_fallthru
          _
        // Predicated region
        $region25: #{tpu_custom_call.1} parent=19 // pred_check
          %p192 = pneg %p83
        $region26: #{tpu_custom_call.1} parent=19 // pred_check_branch
          %194 = sbr.rel (%p192) target = $region28
        $region27: #{tpu_custom_call.1} parent=19 // pred_region
          %s195 = sand.u32 %s16, 1
          %s196 = scalar_lea.sflag [#allocation6], %s195
          %s197 = sand.u32 %s73, 1
          %s198 = smul.addr %s197, 4
          %s199 = scalar_lea.vmem [#allocation7], %s198
          %s201 = ssub.s32 64, 64
          %202 = vsyncadd %s196, %s201
          %s203 = smul.addr %s16, 64
          %s204 = scalar_lea.hbm %s2, %s203
          %s206 = sshll.u32 %s199, 4
          %s207 = int_to_ptr.vmem [resolvable:$true] %s206
          %209 = dma.hbm_to_vmem [thread:$0]  %s204, 64, %s207, %s196
        $region28: #{tpu_custom_call.1} parent=19 // pred_fallthru
          _
      $region20: #{tpu_custom_call.1} parent=5 // pred_fallthru
        _
      %p210 = scmp.le.s32.totalorder 1, %s16
      %p211 = scmp.lt.s32.totalorder %s16, 3
      %p212 = pnand %p210, %p211
      %p213 = pneg %p212
      // Predicated region
      $region29: #{tpu_custom_call.1} parent=5 // pred_check
        _
      $region30: #{tpu_custom_call.1} parent=5 // pred_check_branch
        %215 = sbr.rel (%p212) target = $region32
      $region31: #{tpu_custom_call.1} parent=5 // pred_region
        %s216 = ssub.s32 %s16, 1
        // Predicated region
        $region33: #{tpu_custom_call.1} parent=31 // pred_check
          %p217 = pneg %p37
        $region34: #{tpu_custom_call.1} parent=31 // pred_check_branch
          %219 = sbr.rel (%p217) target = $region36
        $region35: #{tpu_custom_call.1} parent=31 // pred_region
          %220 = dma.done [#allocation3], 256
        $region36: #{tpu_custom_call.1} parent=31 // pred_fallthru
          _
        %s221 = sand.u32 %s21, 1
        %s222 = scalar_lea.sflag [#allocation6], %s221
        %s223 = sand.u32 %s50, 1
        %s224 = smul.addr %s223, 1024
        %s225 = scalar_lea.vmem [#allocation5], %s224
        // Predicated region
        $region37: #{tpu_custom_call.1} parent=31 // pred_check
          %p226 = pneg %p63
        $region38: #{tpu_custom_call.1} parent=31 // pred_check_branch
          %228 = sbr.rel (%p226) target = $region40
        $region39: #{tpu_custom_call.1} parent=31 // pred_region
          %229 = dma.done %s222, 16384
        $region40: #{tpu_custom_call.1} parent=31 // pred_fallthru
          _
        %s230 = sand.u32 %s21, 1
        %s231 = scalar_lea.sflag [#allocation6], %s230
        %s232 = sand.u32 %s76, 1
        %s233 = smul.addr %s232, 4
        %s234 = scalar_lea.vmem [#allocation7], %s233
        // Predicated region
        $region41: #{tpu_custom_call.1} parent=31 // pred_check
          %p235 = pneg %p89
        $region42: #{tpu_custom_call.1} parent=31 // pred_check_branch
          %237 = sbr.rel (%p235) target = $region44
        $region43: #{tpu_custom_call.1} parent=31 // pred_region
          %238 = dma.done %s231, 64
        $region44: #{tpu_custom_call.1} parent=31 // pred_fallthru
          _
        %p239 = pneg %p37
        %p240 = pneg %p34
        %s241 = sand.u32 %s21, 1
        %s242 = scalar_lea.sflag [#allocation6], %s241
        %s243 = sand.u32 %s50, 1
        %s244 = smul.addr %s243, 1024
        %s245 = scalar_lea.vmem [#allocation5], %s244
        %p246 = pneg %p63
        %p247 = pneg %p60
        %s248 = sand.u32 %s21, 1
        %s249 = scalar_lea.sflag [#allocation6], %s248
        %s250 = sand.u32 %s76, 1
        %s251 = smul.addr %s250, 4
        %s252 = scalar_lea.vmem [#allocation7], %s251
        %p253 = pneg %p89
        %p254 = pneg %p86
        %p255 = pneg %p115
        %p256 = pneg %p112
        %s257 = sand.u32 %s102, 1
        %s258 = scalar_lea.sflag [#allocation4], %s257
        %s259 = sand.u32 %s102, 1
        %s260 = smul.addr %s259, 32
        %s261 = scalar_lea.vmem [#allocation8], %s260
        %s262 = smul.u32 16, %s21
        %v263 = vld [vmem:[#allocation2] sm:$0xff]
        %v264 = vld [vmem:[#allocation2 + $0x8] sm:$0xff]
        %s265 = smul.u32 %s21, 128
        %s266 = sshra.s32 %s265, 7
        %s267 = sand.u32 %s265, 127
        %s268 = smul.addr %s266, 8
        %s269 = scalar_lea.vmem [#allocation2], %s268
        %v270 = vld [vmem:[%s269] sm:$0xff]
        %v271 = vld [vmem:[%s225] sm:$0xff]
        %v272 = vld [vmem:[%s225 + $0x8] sm:$0xff]
        %v273 = vld [vmem:[%s225 + $0x10] sm:$0xff]
        %v274 = vld [vmem:[%s225 + $0x18] sm:$0xff]
        %v275 = vld [vmem:[%s225 + $0x20] sm:$0xff]
        %v276 = vld [vmem:[%s225 + $0x28] sm:$0xff]
        %v277 = vld [vmem:[%s225 + $0x30] sm:$0xff]
        %v278 = vld [vmem:[%s225 + $0x38] sm:$0xff]
        %v279 = vld [vmem:[%s225 + $0x40] sm:$0xff]
        %v280 = vld [vmem:[%s225 + $0x48] sm:$0xff]
        %v281 = vld [vmem:[%s225 + $0x50] sm:$0xff]
        %v282 = vld [vmem:[%s225 + $0x58] sm:$0xff]
        %v283 = vld [vmem:[%s225 + $0x60] sm:$0xff]
        %v284 = vld [vmem:[%s225 + $0x68] sm:$0xff]
        %v285 = vld [vmem:[%s225 + $0x70] sm:$0xff]
        %v286 = vld [vmem:[%s225 + $0x78] sm:$0xff]
        %v287 = vld [vmem:[%s225 + $0x80] sm:$0xff]
        %v288 = vld [vmem:[%s225 + $0x88] sm:$0xff]
        %v289 = vld [vmem:[%s225 + $0x90] sm:$0xff]
        %v290 = vld [vmem:[%s225 + $0x98] sm:$0xff]
        %v291 = vld [vmem:[%s225 + $0xa0] sm:$0xff]
        %v292 = vld [vmem:[%s225 + $0xa8] sm:$0xff]
        %v293 = vld [vmem:[%s225 + $0xb0] sm:$0xff]
        %v294 = vld [vmem:[%s225 + $0xb8] sm:$0xff]
        %v295 = vld [vmem:[%s225 + $0xc0] sm:$0xff]
        %v296 = vld [vmem:[%s225 + $0xc8] sm:$0xff]
        %v297 = vld [vmem:[%s225 + $0xd0] sm:$0xff]
        %v298 = vld [vmem:[%s225 + $0xd8] sm:$0xff]
        %v299 = vld [vmem:[%s225 + $0xe0] sm:$0xff]
        %v300 = vld [vmem:[%s225 + $0xe8] sm:$0xff]
        %v301 = vld [vmem:[%s225 + $0xf0] sm:$0xff]
        %v302 = vld [vmem:[%s225 + $0xf8] sm:$0xff]
        %v303 = vld [vmem:[%s234] sm:$0x1]
        %v304 = vlaneseq
        %v305 = vshrl.u32 %v304, 7
        %v306 = vsub.s32 0, %v305
        %v307 = vrot.slane %v303, %v306
        %308 = vmatprep.subr.mxu0 %v302
        %309 = vmatpush1.xpose.msra.mxu0 %v301
        %310 = vmatprep.subr.mxu0 %v300
        %311 = vmatpush1.xpose.msra.mxu0 %v299
        %312 = vmatprep.subr.mxu0 %v298
        %313 = vmatpush1.xpose.msra.mxu0 %v297
        %314 = vmatprep.subr.mxu0 %v296
        %315 = vmatpush1.xpose.msra.mxu0 %v295
        %316 = vmatprep.subr.mxu0 %v294
        %317 = vmatpush1.xpose.msra.mxu0 %v293
        %318 = vmatprep.subr.mxu0 %v292
        %319 = vmatpush1.xpose.msra.mxu0 %v291
        %320 = vmatprep.subr.mxu0 %v290
        %321 = vmatpush1.xpose.msra.mxu0 %v289
        %322 = vmatprep.subr.mxu0 %v288
        %323 = vmatpush1.xpose.msra.mxu0 %v287
        %324 = vmatprep.subr.mxu0 %v286
        %325 = vmatpush1.xpose.msra.mxu0 %v285
        %326 = vmatprep.subr.mxu0 %v284
        %327 = vmatpush1.xpose.msra.mxu0 %v283
        %328 = vmatprep.subr.mxu0 %v282
        %329 = vmatpush1.xpose.msra.mxu0 %v281
        %330 = vmatprep.subr.mxu0 %v280
        %331 = vmatpush1.xpose.msra.mxu0 %v279
        %332 = vmatprep.subr.mxu0 %v278
        %333 = vmatpush1.xpose.msra.mxu0 %v277
        %334 = vmatprep.subr.mxu0 %v276
        %335 = vmatpush1.xpose.msra.mxu0 %v275
        %336 = vmatprep.subr.mxu0 %v274
        %337 = vmatpush1.xpose.msra.mxu0 %v273
        %338 = vmatprep.subr.mxu0 %v272
        %339 = vmatpush1.xpose.msra.mxu0 %v271
        %340 = vmatprep.subr.mxu0 0.0
        %341 = vmatpush2.xpose.msra.mxu0 0.0
        %342 = vmatprep.subr.mxu0 0.0
        %343 = vmatpush2.xpose.msra.mxu0 0.0
        %344 = vmatprep.subr.mxu0 0.0
        %345 = vmatpush2.xpose.msra.mxu0 0.0
        %346 = vmatprep.subr.mxu0 0.0
        %347 = vmatpush2.xpose.msra.mxu0 0.0
        %348 = vmatprep.subr.mxu0 0.0
        %349 = vmatpush2.xpose.msra.mxu0 0.0
        %350 = vmatprep.subr.mxu0 0.0
        %351 = vmatpush2.xpose.msra.mxu0 0.0
        %352 = vmatprep.subr.mxu0 0.0
        %353 = vmatpush2.xpose.msra.mxu0 0.0
        %354 = vmatprep.subr.mxu0 0.0
        %355 = vmatpush2.xpose.msra.mxu0 0.0
        %356 = vmatprep.subr.mxu0 0.0
        %357 = vmatpush2.xpose.msra.mxu0 0.0
        %358 = vmatprep.subr.mxu0 0.0
        %359 = vmatpush2.xpose.msra.mxu0 0.0
        %360 = vmatprep.subr.mxu0 0.0
        %361 = vmatpush2.xpose.msra.mxu0 0.0
        %362 = vmatprep.subr.mxu0 0.0
        %363 = vmatpush2.xpose.msra.mxu0 0.0
        %364 = vmatprep.subr.mxu0 0.0
        %365 = vmatpush2.xpose.msra.mxu0 0.0
        %366 = vmatprep.subr.mxu0 0.0
        %367 = vmatpush2.xpose.msra.mxu0 0.0
        %368 = vmatprep.subr.mxu0 0.0
        %369 = vmatpush2.xpose.msra.mxu0 0.0
        %370 = vmatprep.subr.mxu0 0.0
        %371 = vmatpush2.xpose.msra.mxu0 0.0
        %372 = vmatprep.mubr.f32.mxu0 %v264
        %373 = vmatmul.mubr.f32.gmra.mxu0 %v263
        %v374 = vpop.f32.mrf.mxu0
        %v375 = vadd.f32 %v307, %v374
        %v376 = vpop.f32.mrf.mxu0
        %377 = vdwg.mxu0
        %v378 = vxor.u32 %v375, 2147483648
        %v379 = vmul.f32 %v378, 1.442695
        %v380 = vpow.pop %v379
        %v381 = vadd.f32 %v380, 1.0
        %v382 = vrcp.pop %v381
        %v383 = vmul.f32 1.0, %v382
        %v384 = vmul.f32 %v375, %v383
        %v385 = vadd.f32 %v270, %v384
        %v387 = vcombine.high %v385, %v385
        %v389 = vunpack.c.l.s4 1966171168
        %v390 = vunpack.c.0.s8 %v389
        %v391 = vlaneseq
        %v392 = vshrl.u32 %v391, 7
        %v393 = vsub.s32 %v390, %v392
        %v394 = vrot.slane %v385, %v393
        %v396 = vunpack.c.l.s4 1966171168
        %v397 = vunpack.c.0.s8 %v396
        %v398 = vlaneseq
        %v399 = vshrl.u32 %v398, 7
        %v400 = vsub.s32 %v397, %v399
        %v401 = vrot.slane %v387, %v400
        %v402 = vcombine.high %v394, %v394
        %v403 = vcombine.high %v401, %v401
        %v405 = vunpack.c.l.s4 1966171168
        %v406 = vunpack.c.0.s8 %v405
        %v407 = vlaneseq
        %v408 = vshrl.u32 %v407, 7
        %v409 = vsub.s32 %v406, %v408
        %v410 = vrot.slane %v394, %v409
        %v412 = vunpack.c.l.s4 1966171168
        %v413 = vunpack.c.0.s8 %v412
        %v414 = vlaneseq
        %v415 = vshrl.u32 %v414, 7
        %v416 = vsub.s32 %v413, %v415
        %v417 = vrot.slane %v401, %v416
        %v419 = vunpack.c.l.s4 1966171168
        %v420 = vunpack.c.0.s8 %v419
        %v421 = vlaneseq
        %v422 = vshrl.u32 %v421, 7
        %v423 = vsub.s32 %v420, %v422
        %v424 = vrot.slane %v402, %v423
        %v426 = vunpack.c.l.s4 1966171168
        %v427 = vunpack.c.0.s8 %v426
        %v428 = vlaneseq
        %v429 = vshrl.u32 %v428, 7
        %v430 = vsub.s32 %v427, %v429
        %v431 = vrot.slane %v403, %v430
        %v432 = vcombine.high %v410, %v410
        %v433 = vcombine.high %v417, %v417
        %v434 = vcombine.high %v424, %v424
        %v435 = vcombine.high %v431, %v431
        %444 = vst [vmem:[%s261] sm:$0x1] %v410
        %445 = vst [vmem:[%s261 + $0x4] sm:$0x1] %v424
        %446 = vst [vmem:[%s261 + $0x8] sm:$0x1] %v432
        %447 = vst [vmem:[%s261 + $0xc] sm:$0x1] %v434
        %448 = vst [vmem:[%s261 + $0x10] sm:$0x1] %v417
        %449 = vst [vmem:[%s261 + $0x14] sm:$0x1] %v431
        %450 = vst [vmem:[%s261 + $0x18] sm:$0x1] %v433
        %451 = vst [vmem:[%s261 + $0x1c] sm:$0x1] %v435
        %s452 = scalar_lea.vmem %s225, 256 [#allocation5]
        %v453 = vld [vmem:[%s452] sm:$0xff]
        %v454 = vld [vmem:[%s452 + $0x8] sm:$0xff]
        %v455 = vld [vmem:[%s452 + $0x10] sm:$0xff]
        %v456 = vld [vmem:[%s452 + $0x18] sm:$0xff]
        %v457 = vld [vmem:[%s452 + $0x20] sm:$0xff]
        %v458 = vld [vmem:[%s452 + $0x28] sm:$0xff]
        %v459 = vld [vmem:[%s452 + $0x30] sm:$0xff]
        %v460 = vld [vmem:[%s452 + $0x38] sm:$0xff]
        %v461 = vld [vmem:[%s452 + $0x40] sm:$0xff]
        %v462 = vld [vmem:[%s452 + $0x48] sm:$0xff]
        %v463 = vld [vmem:[%s452 + $0x50] sm:$0xff]
        %v464 = vld [vmem:[%s452 + $0x58] sm:$0xff]
        %v465 = vld [vmem:[%s452 + $0x60] sm:$0xff]
        %v466 = vld [vmem:[%s452 + $0x68] sm:$0xff]
        %v467 = vld [vmem:[%s452 + $0x70] sm:$0xff]
        %v468 = vld [vmem:[%s452 + $0x78] sm:$0xff]
        %v469 = vld [vmem:[%s452 + $0x80] sm:$0xff]
        %v470 = vld [vmem:[%s452 + $0x88] sm:$0xff]
        %v471 = vld [vmem:[%s452 + $0x90] sm:$0xff]
        %v472 = vld [vmem:[%s452 + $0x98] sm:$0xff]
        %v473 = vld [vmem:[%s452 + $0xa0] sm:$0xff]
        %v474 = vld [vmem:[%s452 + $0xa8] sm:$0xff]
        %v475 = vld [vmem:[%s452 + $0xb0] sm:$0xff]
        %v476 = vld [vmem:[%s452 + $0xb8] sm:$0xff]
        %v477 = vld [vmem:[%s452 + $0xc0] sm:$0xff]
        %v478 = vld [vmem:[%s452 + $0xc8] sm:$0xff]
        %v479 = vld [vmem:[%s452 + $0xd0] sm:$0xff]
        %v480 = vld [vmem:[%s452 + $0xd8] sm:$0xff]
        %v481 = vld [vmem:[%s452 + $0xe0] sm:$0xff]
        %v482 = vld [vmem:[%s452 + $0xe8] sm:$0xff]
        %v483 = vld [vmem:[%s452 + $0xf0] sm:$0xff]
        %v484 = vld [vmem:[%s452 + $0xf8] sm:$0xff]
        %v485 = vld [vmem:[%s234 + $0x1] sm:$0x1]
        %v486 = vlaneseq
        %v487 = vshrl.u32 %v486, 7
        %v488 = vsub.s32 0, %v487
        %v489 = vrot.slane %v485, %v488
        %490 = vmatprep.subr.mxu0 %v484
        %491 = vmatpush1.xpose.msra.mxu0 %v483
        %492 = vmatprep.subr.mxu0 %v482
        %493 = vmatpush1.xpose.msra.mxu0 %v481
        %494 = vmatprep.subr.mxu0 %v480
        %495 = vmatpush1.xpose.msra.mxu0 %v479
        %496 = vmatprep.subr.mxu0 %v478
        %497 = vmatpush1.xpose.msra.mxu0 %v477
        %498 = vmatprep.subr.mxu0 %v476
        %499 = vmatpush1.xpose.msra.mxu0 %v475
        %500 = vmatprep.subr.mxu0 %v474
        %501 = vmatpush1.xpose.msra.mxu0 %v473
        %502 = vmatprep.subr.mxu0 %v472
        %503 = vmatpush1.xpose.msra.mxu0 %v471
        %504 = vmatprep.subr.mxu0 %v470
        %505 = vmatpush1.xpose.msra.mxu0 %v469
        %506 = vmatprep.subr.mxu0 %v468
        %507 = vmatpush1.xpose.msra.mxu0 %v467
        %508 = vmatprep.subr.mxu0 %v466
        %509 = vmatpush1.xpose.msra.mxu0 %v465
        %510 = vmatprep.subr.mxu0 %v464
        %511 = vmatpush1.xpose.msra.mxu0 %v463
        %512 = vmatprep.subr.mxu0 %v462
        %513 = vmatpush1.xpose.msra.mxu0 %v461
        %514 = vmatprep.subr.mxu0 %v460
        %515 = vmatpush1.xpose.msra.mxu0 %v459
        %516 = vmatprep.subr.mxu0 %v458
        %517 = vmatpush1.xpose.msra.mxu0 %v457
        %518 = vmatprep.subr.mxu0 %v456
        %519 = vmatpush1.xpose.msra.mxu0 %v455
        %520 = vmatprep.subr.mxu0 %v454
        %521 = vmatpush1.xpose.msra.mxu0 %v453
        %522 = vmatprep.subr.mxu0 0.0
        %523 = vmatpush2.xpose.msra.mxu0 0.0
        %524 = vmatprep.subr.mxu0 0.0
        %525 = vmatpush2.xpose.msra.mxu0 0.0
        %526 = vmatprep.subr.mxu0 0.0
        %527 = vmatpush2.xpose.msra.mxu0 0.0
        %528 = vmatprep.subr.mxu0 0.0
        %529 = vmatpush2.xpose.msra.mxu0 0.0
        %530 = vmatprep.subr.mxu0 0.0
        %531 = vmatpush2.xpose.msra.mxu0 0.0
        %532 = vmatprep.subr.mxu0 0.0
        %533 = vmatpush2.xpose.msra.mxu0 0.0
        %534 = vmatprep.subr.mxu0 0.0
        %535 = vmatpush2.xpose.msra.mxu0 0.0
        %536 = vmatprep.subr.mxu0 0.0
        %537 = vmatpush2.xpose.msra.mxu0 0.0
        %538 = vmatprep.subr.mxu0 0.0
        %539 = vmatpush2.xpose.msra.mxu0 0.0
        %540 = vmatprep.subr.mxu0 0.0
        %541 = vmatpush2.xpose.msra.mxu0 0.0
        %542 = vmatprep.subr.mxu0 0.0
        %543 = vmatpush2.xpose.msra.mxu0 0.0
        %544 = vmatprep.subr.mxu0 0.0
        %545 = vmatpush2.xpose.msra.mxu0 0.0
        %546 = vmatprep.subr.mxu0 0.0
        %547 = vmatpush2.xpose.msra.mxu0 0.0
        %548 = vmatprep.subr.mxu0 0.0
        %549 = vmatpush2.xpose.msra.mxu0 0.0
        %550 = vmatprep.subr.mxu0 0.0
        %551 = vmatpush2.xpose.msra.mxu0 0.0
        %552 = vmatprep.subr.mxu0 0.0
        %553 = vmatpush2.xpose.msra.mxu0 0.0
        %554 = vmatprep.mubr.f32.mxu0 %v264
        %555 = vmatmul.mubr.f32.gmra.mxu0 %v263
        %v556 = vpop.f32.mrf.mxu0
        %v557 = vadd.f32 %v489, %v556
        %v558 = vpop.f32.mrf.mxu0
        %559 = vdwg.mxu0
        %v560 = vxor.u32 %v557, 2147483648
        %v561 = vmul.f32 %v560, 1.442695
        %v562 = vpow.pop %v561
        %v563 = vadd.f32 %v562, 1.0
        %v564 = vrcp.pop %v563
        %v565 = vmul.f32 1.0, %v564
        %v566 = vmul.f32 %v557, %v565
        %v567 = vadd.f32 %v270, %v566
        %v569 = vcombine.high %v567, %v567
        %v571 = vunpack.c.l.s4 1966171168
        %v572 = vunpack.c.0.s8 %v571
        %v573 = vlaneseq
        %v574 = vshrl.u32 %v573, 7
        %v575 = vsub.s32 %v572, %v574
        %v576 = vrot.slane %v567, %v575
        %v578 = vunpack.c.l.s4 1966171168
        %v579 = vunpack.c.0.s8 %v578
        %v580 = vlaneseq
        %v581 = vshrl.u32 %v580, 7
        %v582 = vsub.s32 %v579, %v581
        %v583 = vrot.slane %v569, %v582
        %v584 = vcombine.high %v576, %v576
        %v585 = vcombine.high %v583, %v583
        %v587 = vunpack.c.l.s4 1966171168
        %v588 = vunpack.c.0.s8 %v587
        %v589 = vlaneseq
        %v590 = vshrl.u32 %v589, 7
        %v591 = vsub.s32 %v588, %v590
        %v592 = vrot.slane %v576, %v591
        %v594 = vunpack.c.l.s4 1966171168
        %v595 = vunpack.c.0.s8 %v594
        %v596 = vlaneseq
        %v597 = vshrl.u32 %v596, 7
        %v598 = vsub.s32 %v595, %v597
        %v599 = vrot.slane %v583, %v598
        %v601 = vunpack.c.l.s4 1966171168
        %v602 = vunpack.c.0.s8 %v601
        %v603 = vlaneseq
        %v604 = vshrl.u32 %v603, 7
        %v605 = vsub.s32 %v602, %v604
        %v606 = vrot.slane %v584, %v605
        %v608 = vunpack.c.l.s4 1966171168
        %v609 = vunpack.c.0.s8 %v608
        %v610 = vlaneseq
        %v611 = vshrl.u32 %v610, 7
        %v612 = vsub.s32 %v609, %v611
        %v613 = vrot.slane %v585, %v612
        %v614 = vcombine.high %v592, %v592
        %v615 = vcombine.high %v599, %v599
        %v616 = vcombine.high %v606, %v606
        %v617 = vcombine.high %v613, %v613
        %626 = vst [vmem:[%s261 + $0x1] sm:$0x1] %v592
        %627 = vst [vmem:[%s261 + $0x5] sm:$0x1] %v606
        %628 = vst [vmem:[%s261 + $0x9] sm:$0x1] %v614
        %629 = vst [vmem:[%s261 + $0xd] sm:$0x1] %v616
        %630 = vst [vmem:[%s261 + $0x11] sm:$0x1] %v599
        %631 = vst [vmem:[%s261 + $0x15] sm:$0x1] %v613
        %632 = vst [vmem:[%s261 + $0x19] sm:$0x1] %v615
        %633 = vst [vmem:[%s261 + $0x1d] sm:$0x1] %v617
        %s634 = scalar_lea.vmem %s225, 512 [#allocation5]
        %v635 = vld [vmem:[%s634] sm:$0xff]
        %v636 = vld [vmem:[%s634 + $0x8] sm:$0xff]
        %v637 = vld [vmem:[%s634 + $0x10] sm:$0xff]
        %v638 = vld [vmem:[%s634 + $0x18] sm:$0xff]
        %v639 = vld [vmem:[%s634 + $0x20] sm:$0xff]
        %v640 = vld [vmem:[%s634 + $0x28] sm:$0xff]
        %v641 = vld [vmem:[%s634 + $0x30] sm:$0xff]
        %v642 = vld [vmem:[%s634 + $0x38] sm:$0xff]
        %v643 = vld [vmem:[%s634 + $0x40] sm:$0xff]
        %v644 = vld [vmem:[%s634 + $0x48] sm:$0xff]
        %v645 = vld [vmem:[%s634 + $0x50] sm:$0xff]
        %v646 = vld [vmem:[%s634 + $0x58] sm:$0xff]
        %v647 = vld [vmem:[%s634 + $0x60] sm:$0xff]
        %v648 = vld [vmem:[%s634 + $0x68] sm:$0xff]
        %v649 = vld [vmem:[%s634 + $0x70] sm:$0xff]
        %v650 = vld [vmem:[%s634 + $0x78] sm:$0xff]
        %v651 = vld [vmem:[%s634 + $0x80] sm:$0xff]
        %v652 = vld [vmem:[%s634 + $0x88] sm:$0xff]
        %v653 = vld [vmem:[%s634 + $0x90] sm:$0xff]
        %v654 = vld [vmem:[%s634 + $0x98] sm:$0xff]
        %v655 = vld [vmem:[%s634 + $0xa0] sm:$0xff]
        %v656 = vld [vmem:[%s634 + $0xa8] sm:$0xff]
        %v657 = vld [vmem:[%s634 + $0xb0] sm:$0xff]
        %v658 = vld [vmem:[%s634 + $0xb8] sm:$0xff]
        %v659 = vld [vmem:[%s634 + $0xc0] sm:$0xff]
        %v660 = vld [vmem:[%s634 + $0xc8] sm:$0xff]
        %v661 = vld [vmem:[%s634 + $0xd0] sm:$0xff]
        %v662 = vld [vmem:[%s634 + $0xd8] sm:$0xff]
        %v663 = vld [vmem:[%s634 + $0xe0] sm:$0xff]
        %v664 = vld [vmem:[%s634 + $0xe8] sm:$0xff]
        %v665 = vld [vmem:[%s634 + $0xf0] sm:$0xff]
        %v666 = vld [vmem:[%s634 + $0xf8] sm:$0xff]
        %v667 = vld [vmem:[%s234 + $0x2] sm:$0x1]
        %v668 = vlaneseq
        %v669 = vshrl.u32 %v668, 7
        %v670 = vsub.s32 0, %v669
        %v671 = vrot.slane %v667, %v670
        %672 = vmatprep.subr.mxu0 %v666
        %673 = vmatpush1.xpose.msra.mxu0 %v665
        %674 = vmatprep.subr.mxu0 %v664
        %675 = vmatpush1.xpose.msra.mxu0 %v663
        %676 = vmatprep.subr.mxu0 %v662
        %677 = vmatpush1.xpose.msra.mxu0 %v661
        %678 = vmatprep.subr.mxu0 %v660
        %679 = vmatpush1.xpose.msra.mxu0 %v659
        %680 = vmatprep.subr.mxu0 %v658
        %681 = vmatpush1.xpose.msra.mxu0 %v657
        %682 = vmatprep.subr.mxu0 %v656
        %683 = vmatpush1.xpose.msra.mxu0 %v655
        %684 = vmatprep.subr.mxu0 %v654
        %685 = vmatpush1.xpose.msra.mxu0 %v653
        %686 = vmatprep.subr.mxu0 %v652
        %687 = vmatpush1.xpose.msra.mxu0 %v651
        %688 = vmatprep.subr.mxu0 %v650
        %689 = vmatpush1.xpose.msra.mxu0 %v649
        %690 = vmatprep.subr.mxu0 %v648
        %691 = vmatpush1.xpose.msra.mxu0 %v647
        %692 = vmatprep.subr.mxu0 %v646
        %693 = vmatpush1.xpose.msra.mxu0 %v645
        %694 = vmatprep.subr.mxu0 %v644
        %695 = vmatpush1.xpose.msra.mxu0 %v643
        %696 = vmatprep.subr.mxu0 %v642
        %697 = vmatpush1.xpose.msra.mxu0 %v641
        %698 = vmatprep.subr.mxu0 %v640
        %699 = vmatpush1.xpose.msra.mxu0 %v639
        %700 = vmatprep.subr.mxu0 %v638
        %701 = vmatpush1.xpose.msra.mxu0 %v637
        %702 = vmatprep.subr.mxu0 %v636
        %703 = vmatpush1.xpose.msra.mxu0 %v635
        %704 = vmatprep.subr.mxu0 0.0
        %705 = vmatpush2.xpose.msra.mxu0 0.0
        %706 = vmatprep.subr.mxu0 0.0
        %707 = vmatpush2.xpose.msra.mxu0 0.0
        %708 = vmatprep.subr.mxu0 0.0
        %709 = vmatpush2.xpose.msra.mxu0 0.0
        %710 = vmatprep.subr.mxu0 0.0
        %711 = vmatpush2.xpose.msra.mxu0 0.0
        %712 = vmatprep.subr.mxu0 0.0
        %713 = vmatpush2.xpose.msra.mxu0 0.0
        %714 = vmatprep.subr.mxu0 0.0
        %715 = vmatpush2.xpose.msra.mxu0 0.0
        %716 = vmatprep.subr.mxu0 0.0
        %717 = vmatpush2.xpose.msra.mxu0 0.0
        %718 = vmatprep.subr.mxu0 0.0
        %719 = vmatpush2.xpose.msra.mxu0 0.0
        %720 = vmatprep.subr.mxu0 0.0
        %721 = vmatpush2.xpose.msra.mxu0 0.0
        %722 = vmatprep.subr.mxu0 0.0
        %723 = vmatpush2.xpose.msra.mxu0 0.0
        %724 = vmatprep.subr.mxu0 0.0
        %725 = vmatpush2.xpose.msra.mxu0 0.0
        %726 = vmatprep.subr.mxu0 0.0
        %727 = vmatpush2.xpose.msra.mxu0 0.0
        %728 = vmatprep.subr.mxu0 0.0
        %729 = vmatpush2.xpose.msra.mxu0 0.0
        %730 = vmatprep.subr.mxu0 0.0
        %731 = vmatpush2.xpose.msra.mxu0 0.0
        %732 = vmatprep.subr.mxu0 0.0
        %733 = vmatpush2.xpose.msra.mxu0 0.0
        %734 = vmatprep.subr.mxu0 0.0
        %735 = vmatpush2.xpose.msra.mxu0 0.0
        %736 = vmatprep.mubr.f32.mxu0 %v264
        %737 = vmatmul.mubr.f32.gmra.mxu0 %v263
        %v738 = vpop.f32.mrf.mxu0
        %v739 = vadd.f32 %v671, %v738
        %v740 = vpop.f32.mrf.mxu0
        %741 = vdwg.mxu0
        %v742 = vxor.u32 %v739, 2147483648
        %v743 = vmul.f32 %v742, 1.442695
        %v744 = vpow.pop %v743
        %v745 = vadd.f32 %v744, 1.0
        %v746 = vrcp.pop %v745
        %v747 = vmul.f32 1.0, %v746
        %v748 = vmul.f32 %v739, %v747
        %v749 = vadd.f32 %v270, %v748
        %v751 = vcombine.high %v749, %v749
        %v753 = vunpack.c.l.s4 1966171168
        %v754 = vunpack.c.0.s8 %v753
        %v755 = vlaneseq
        %v756 = vshrl.u32 %v755, 7
        %v757 = vsub.s32 %v754, %v756
        %v758 = vrot.slane %v749, %v757
        %v760 = vunpack.c.l.s4 1966171168
        %v761 = vunpack.c.0.s8 %v760
        %v762 = vlaneseq
        %v763 = vshrl.u32 %v762, 7
        %v764 = vsub.s32 %v761, %v763
        %v765 = vrot.slane %v751, %v764
        %v766 = vcombine.high %v758, %v758
        %v767 = vcombine.high %v765, %v765
        %v769 = vunpack.c.l.s4 1966171168
        %v770 = vunpack.c.0.s8 %v769
        %v771 = vlaneseq
        %v772 = vshrl.u32 %v771, 7
        %v773 = vsub.s32 %v770, %v772
        %v774 = vrot.slane %v758, %v773
        %v776 = vunpack.c.l.s4 1966171168
        %v777 = vunpack.c.0.s8 %v776
        %v778 = vlaneseq
        %v779 = vshrl.u32 %v778, 7
        %v780 = vsub.s32 %v777, %v779
        %v781 = vrot.slane %v765, %v780
        %v783 = vunpack.c.l.s4 1966171168
        %v784 = vunpack.c.0.s8 %v783
        %v785 = vlaneseq
        %v786 = vshrl.u32 %v785, 7
        %v787 = vsub.s32 %v784, %v786
        %v788 = vrot.slane %v766, %v787
        %v790 = vunpack.c.l.s4 1966171168
        %v791 = vunpack.c.0.s8 %v790
        %v792 = vlaneseq
        %v793 = vshrl.u32 %v792, 7
        %v794 = vsub.s32 %v791, %v793
        %v795 = vrot.slane %v767, %v794
        %v796 = vcombine.high %v774, %v774
        %v797 = vcombine.high %v781, %v781
        %v798 = vcombine.high %v788, %v788
        %v799 = vcombine.high %v795, %v795
        %808 = vst [vmem:[%s261 + $0x2] sm:$0x1] %v774
        %809 = vst [vmem:[%s261 + $0x6] sm:$0x1] %v788
        %810 = vst [vmem:[%s261 + $0xa] sm:$0x1] %v796
        %811 = vst [vmem:[%s261 + $0xe] sm:$0x1] %v798
        %812 = vst [vmem:[%s261 + $0x12] sm:$0x1] %v781
        %813 = vst [vmem:[%s261 + $0x16] sm:$0x1] %v795
        %814 = vst [vmem:[%s261 + $0x1a] sm:$0x1] %v797
        %815 = vst [vmem:[%s261 + $0x1e] sm:$0x1] %v799
        %s816 = scalar_lea.vmem %s225, 768 [#allocation5]
        %v817 = vld [vmem:[%s816] sm:$0xff]
        %v818 = vld [vmem:[%s816 + $0x8] sm:$0xff]
        %v819 = vld [vmem:[%s816 + $0x10] sm:$0xff]
        %v820 = vld [vmem:[%s816 + $0x18] sm:$0xff]
        %v821 = vld [vmem:[%s816 + $0x20] sm:$0xff]
        %v822 = vld [vmem:[%s816 + $0x28] sm:$0xff]
        %v823 = vld [vmem:[%s816 + $0x30] sm:$0xff]
        %v824 = vld [vmem:[%s816 + $0x38] sm:$0xff]
        %v825 = vld [vmem:[%s816 + $0x40] sm:$0xff]
        %v826 = vld [vmem:[%s816 + $0x48] sm:$0xff]
        %v827 = vld [vmem:[%s816 + $0x50] sm:$0xff]
        %v828 = vld [vmem:[%s816 + $0x58] sm:$0xff]
        %v829 = vld [vmem:[%s816 + $0x60] sm:$0xff]
        %v830 = vld [vmem:[%s816 + $0x68] sm:$0xff]
        %v831 = vld [vmem:[%s816 + $0x70] sm:$0xff]
        %v832 = vld [vmem:[%s816 + $0x78] sm:$0xff]
        %v833 = vld [vmem:[%s816 + $0x80] sm:$0xff]
        %v834 = vld [vmem:[%s816 + $0x88] sm:$0xff]
        %v835 = vld [vmem:[%s816 + $0x90] sm:$0xff]
        %v836 = vld [vmem:[%s816 + $0x98] sm:$0xff]
        %v837 = vld [vmem:[%s816 + $0xa0] sm:$0xff]
        %v838 = vld [vmem:[%s816 + $0xa8] sm:$0xff]
        %v839 = vld [vmem:[%s816 + $0xb0] sm:$0xff]
        %v840 = vld [vmem:[%s816 + $0xb8] sm:$0xff]
        %v841 = vld [vmem:[%s816 + $0xc0] sm:$0xff]
        %v842 = vld [vmem:[%s816 + $0xc8] sm:$0xff]
        %v843 = vld [vmem:[%s816 + $0xd0] sm:$0xff]
        %v844 = vld [vmem:[%s816 + $0xd8] sm:$0xff]
        %v845 = vld [vmem:[%s816 + $0xe0] sm:$0xff]
        %v846 = vld [vmem:[%s816 + $0xe8] sm:$0xff]
        %v847 = vld [vmem:[%s816 + $0xf0] sm:$0xff]
        %v848 = vld [vmem:[%s816 + $0xf8] sm:$0xff]
        %v849 = vld [vmem:[%s234 + $0x3] sm:$0x1]
        %v850 = vlaneseq
        %v851 = vshrl.u32 %v850, 7
        %v852 = vsub.s32 0, %v851
        %v853 = vrot.slane %v849, %v852
        %854 = vmatprep.subr.mxu0 %v848
        %855 = vmatpush1.xpose.msra.mxu0 %v847
        %856 = vmatprep.subr.mxu0 %v846
        %857 = vmatpush1.xpose.msra.mxu0 %v845
        %858 = vmatprep.subr.mxu0 %v844
        %859 = vmatpush1.xpose.msra.mxu0 %v843
        %860 = vmatprep.subr.mxu0 %v842
        %861 = vmatpush1.xpose.msra.mxu0 %v841
        %862 = vmatprep.subr.mxu0 %v840
        %863 = vmatpush1.xpose.msra.mxu0 %v839
        %864 = vmatprep.subr.mxu0 %v838
        %865 = vmatpush1.xpose.msra.mxu0 %v837
        %866 = vmatprep.subr.mxu0 %v836
        %867 = vmatpush1.xpose.msra.mxu0 %v835
        %868 = vmatprep.subr.mxu0 %v834
        %869 = vmatpush1.xpose.msra.mxu0 %v833
        %870 = vmatprep.subr.mxu0 %v832
        %871 = vmatpush1.xpose.msra.mxu0 %v831
        %872 = vmatprep.subr.mxu0 %v830
        %873 = vmatpush1.xpose.msra.mxu0 %v829
        %874 = vmatprep.subr.mxu0 %v828
        %875 = vmatpush1.xpose.msra.mxu0 %v827
        %876 = vmatprep.subr.mxu0 %v826
        %877 = vmatpush1.xpose.msra.mxu0 %v825
        %878 = vmatprep.subr.mxu0 %v824
        %879 = vmatpush1.xpose.msra.mxu0 %v823
        %880 = vmatprep.subr.mxu0 %v822
        %881 = vmatpush1.xpose.msra.mxu0 %v821
        %882 = vmatprep.subr.mxu0 %v820
        %883 = vmatpush1.xpose.msra.mxu0 %v819
        %884 = vmatprep.subr.mxu0 %v818
        %885 = vmatpush1.xpose.msra.mxu0 %v817
        %886 = vmatprep.subr.mxu0 0.0
        %887 = vmatpush2.xpose.msra.mxu0 0.0
        %888 = vmatprep.subr.mxu0 0.0
        %889 = vmatpush2.xpose.msra.mxu0 0.0
        %890 = vmatprep.subr.mxu0 0.0
        %891 = vmatpush2.xpose.msra.mxu0 0.0
        %892 = vmatprep.subr.mxu0 0.0
        %893 = vmatpush2.xpose.msra.mxu0 0.0
        %894 = vmatprep.subr.mxu0 0.0
        %895 = vmatpush2.xpose.msra.mxu0 0.0
        %896 = vmatprep.subr.mxu0 0.0
        %897 = vmatpush2.xpose.msra.mxu0 0.0
        %898 = vmatprep.subr.mxu0 0.0
        %899 = vmatpush2.xpose.msra.mxu0 0.0
        %900 = vmatprep.subr.mxu0 0.0
        %901 = vmatpush2.xpose.msra.mxu0 0.0
        %902 = vmatprep.subr.mxu0 0.0
        %903 = vmatpush2.xpose.msra.mxu0 0.0
        %904 = vmatprep.subr.mxu0 0.0
        %905 = vmatpush2.xpose.msra.mxu0 0.0
        %906 = vmatprep.subr.mxu0 0.0
        %907 = vmatpush2.xpose.msra.mxu0 0.0
        %908 = vmatprep.subr.mxu0 0.0
        %909 = vmatpush2.xpose.msra.mxu0 0.0
        %910 = vmatprep.subr.mxu0 0.0
        %911 = vmatpush2.xpose.msra.mxu0 0.0
        %912 = vmatprep.subr.mxu0 0.0
        %913 = vmatpush2.xpose.msra.mxu0 0.0
        %914 = vmatprep.subr.mxu0 0.0
        %915 = vmatpush2.xpose.msra.mxu0 0.0
        %916 = vmatprep.subr.mxu0 0.0
        %917 = vmatpush2.xpose.msra.mxu0 0.0
        %918 = vmatprep.mubr.f32.mxu0 %v264
        %919 = vmatmul.mubr.f32.gmra.mxu0 %v263
        %v920 = vpop.f32.mrf.mxu0
        %v921 = vadd.f32 %v853, %v920
        %v922 = vpop.f32.mrf.mxu0
        %923 = vdwg.mxu0
        %v924 = vxor.u32 %v921, 2147483648
        %v925 = vmul.f32 %v924, 1.442695
        %v926 = vpow.pop %v925
        %v927 = vadd.f32 %v926, 1.0
        %v928 = vrcp.pop %v927
        %v929 = vmul.f32 1.0, %v928
        %v930 = vmul.f32 %v921, %v929
        %v931 = vadd.f32 %v270, %v930
        %v933 = vcombine.high %v931, %v931
        %v935 = vunpack.c.l.s4 1966171168
        %v936 = vunpack.c.0.s8 %v935
        %v937 = vlaneseq
        %v938 = vshrl.u32 %v937, 7
        %v939 = vsub.s32 %v936, %v938
        %v940 = vrot.slane %v931, %v939
        %v942 = vunpack.c.l.s4 1966171168
        %v943 = vunpack.c.0.s8 %v942
        %v944 = vlaneseq
        %v945 = vshrl.u32 %v944, 7
        %v946 = vsub.s32 %v943, %v945
        %v947 = vrot.slane %v933, %v946
        %v948 = vcombine.high %v940, %v940
        %v949 = vcombine.high %v947, %v947
        %v951 = vunpack.c.l.s4 1966171168
        %v952 = vunpack.c.0.s8 %v951
        %v953 = vlaneseq
        %v954 = vshrl.u32 %v953, 7
        %v955 = vsub.s32 %v952, %v954
        %v956 = vrot.slane %v940, %v955
        %v958 = vunpack.c.l.s4 1966171168
        %v959 = vunpack.c.0.s8 %v958
        %v960 = vlaneseq
        %v961 = vshrl.u32 %v960, 7
        %v962 = vsub.s32 %v959, %v961
        %v963 = vrot.slane %v947, %v962
        %v965 = vunpack.c.l.s4 1966171168
        %v966 = vunpack.c.0.s8 %v965
        %v967 = vlaneseq
        %v968 = vshrl.u32 %v967, 7
        %v969 = vsub.s32 %v966, %v968
        %v970 = vrot.slane %v948, %v969
        %v972 = vunpack.c.l.s4 1966171168
        %v973 = vunpack.c.0.s8 %v972
        %v974 = vlaneseq
        %v975 = vshrl.u32 %v974, 7
        %v976 = vsub.s32 %v973, %v975
        %v977 = vrot.slane %v949, %v976
        %v978 = vcombine.high %v956, %v956
        %v979 = vcombine.high %v963, %v963
        %v980 = vcombine.high %v970, %v970
        %v981 = vcombine.high %v977, %v977
        %990 = vst [vmem:[%s261 + $0x3] sm:$0x1] %v956
        %991 = vst [vmem:[%s261 + $0x7] sm:$0x1] %v970
        %992 = vst [vmem:[%s261 + $0xb] sm:$0x1] %v978
        %993 = vst [vmem:[%s261 + $0xf] sm:$0x1] %v980
        %994 = vst [vmem:[%s261 + $0x13] sm:$0x1] %v963
        %995 = vst [vmem:[%s261 + $0x17] sm:$0x1] %v977
        %996 = vst [vmem:[%s261 + $0x1b] sm:$0x1] %v979
        %997 = vst [vmem:[%s261 + $0x1f] sm:$0x1] %v981
        %s998 = sand.u32 %s102, 1
        %s999 = scalar_lea.sflag [#allocation4], %s998
        %s1000 = sand.u32 %s102, 1
        %s1001 = smul.addr %s1000, 32
        %s1002 = scalar_lea.vmem [#allocation8], %s1001
        // Predicated region
        $region45: #{tpu_custom_call.1} parent=31 // pred_check
          %p1003 = pneg %p112
        $region46: #{tpu_custom_call.1} parent=31 // pred_check_branch
          %1005 = sbr.rel (%p1003) target = $region48
        $region47: #{tpu_custom_call.1} parent=31 // pred_region
          %s1007 = ssub.s32 512, 512
          %1008 = vsyncadd %s999, %s1007
          %s1009 = smul.addr %s21, 64
          %s1010 = scalar_lea.hbm %s3, %s1009
          %s1011 = sshll.u32 %s1002, 4
          %s1012 = int_to_ptr.vmem [resolvable:$true] %s1011
          %1017 = dma.vmem_to_hbm [thread:$0]  %s1012, 512, %s1010, %s999, 64, 128, 4
        $region48: #{tpu_custom_call.1} parent=31 // pred_fallthru
          _
      $region32: #{tpu_custom_call.1} parent=5 // pred_fallthru
        _
      %p1018 = scmp.le.s32.totalorder 2, %s16
      // Predicated region
      $region49: #{tpu_custom_call.1} parent=5 // pred_check
        %p1019 = pneg %p1018
      $region50: #{tpu_custom_call.1} parent=5 // pred_check_branch
        %1021 = sbr.rel (%p1019) target = $region52
      $region51: #{tpu_custom_call.1} parent=5 // pred_region
        %s1022 = ssub.s32 %s16, 2
        // Predicated region
        $region53: #{tpu_custom_call.1} parent=51 // pred_check
          %p1023 = pneg %p118
        $region54: #{tpu_custom_call.1} parent=51 // pred_check_branch
          %1025 = sbr.rel (%p1023) target = $region56
        $region55: #{tpu_custom_call.1} parent=51 // pred_region
          %s1026 = sand.u32 %s103, 1
          %s1027 = scalar_lea.sflag [#allocation4], %s1026
          %s1028 = sand.u32 %s103, 1
          %s1029 = smul.addr %s1028, 32
          %s1030 = scalar_lea.vmem [#allocation8], %s1029
          %1031 = dma.done %s1027, 512
        $region56: #{tpu_custom_call.1} parent=51 // pred_fallthru
          _
      $region52: #{tpu_custom_call.1} parent=5 // pred_fallthru
        _
    $region6: #{tpu_custom_call.1} parent=1 // loop_footer
      %s20 = sadd.s32 1, %s16
    $region7: #{tpu_custom_call.1} parent=1 // loop_footer_branch
      %15 = sbr.rel target = $region3
    $region8: #{tpu_custom_call.1} parent=1 // loop_exit
      _
    %1032 = vsyncpa [#allocation3], 1
    %s1033 = scalar_lea.sflag [#allocation3], 1
    %1034 = vsyncpa %s1033, 1
    %1035 = vsyncpa [#allocation6], 1
    %s1036 = scalar_lea.sflag [#allocation6], 1
    %1037 = vsyncpa %s1036, 1
    %1038 = vsyncpa [#allocation4], 1
    %s1039 = scalar_lea.sflag [#allocation4], 1
    %1040 = vsyncpa %s1039, 1

</llo_original>
